<compile_context>
chip_gen: v7x
topology: tpu7x:2x2x1
jax: 0.10.0
libtpu: 0.0.40
codegen_flags: <defaults>
</compile_context>

<pallas_src>
import math
import jax
import jax.numpy as jnp
from jax.experimental import pallas as pl
from jax.experimental.pallas import tpu as pltpu

L = 4
A = 2 * L * L              # 32 == max(H.size()) for the (30, 32) toric-code PCM
N_CHECKS = 2 * L * L - 2   # 30 == min(H.size()) (unused in forward, kept for clarity)
N_LOGICAL = 4              # rows of the `logical` operator matrix (synthetic)
HALF_PI = math.pi / 2.0
MAX_TILE_B = 1024          # batch rows per grid step: 2 inputs * 2 buffers * tile*A*4B
                           # (+ lane padding) stays well under VMEM limits on v5e/v6e/v7x.


def loss_kernel(logical_ref, y_ref, pred_ref, out_ref, acc_ref):
    # logical_ref: (N_LOGICAL, A) f32 VMEM, resident across the grid
    # y_ref/pred_ref: (tile_b, A) f32 VMEM blocks (batch rows, A on lanes)
    # out_ref: (1, 1) f32 SMEM scalar output (constant block index -> resident)
    # acc_ref: (tile_b, 1) f32 VMEM scratch column accumulator
    step = pl.program_id(0)

    @pl.when(step == 0)
    def _():
        acc_ref[...] = jnp.zeros_like(acc_ref)

    s = y_ref[...] + pred_ref[...]              # tmp + res, (tile_b, A)
    lg = logical_ref[...]                       # (N_LOGICAL, A)

    # N_LOGICAL == 4: unrolled VPU multiply + XLU lane-reduce per logical row.
    # (4 x 32 x tile_b is far too small to benefit from the MXU.)
    col = jnp.zeros((s.shape[0], 1), jnp.float32)
    for r in range(N_LOGICAL):
        la = jnp.sum(s * lg[r:r + 1, :], axis=-1, keepdims=True)   # (tile_b, 1)
        col = col + jnp.abs(jnp.sin(la * HALF_PI))
    acc_ref[...] += col

    # Single full reduction + scalar store, only on the final grid step.
    @pl.when(step == pl.num_programs(0) - 1)
    def _():
        out_ref[0, 0] = jnp.sum(acc_ref[...])


@jax.jit
def loss_func(pred, y, logical):
    """pred, y: (batch*A, 1) f32 column vectors (torch layout); logical: (N_LOGICAL, A)."""
    n = pred.shape[0]
    assert n % A == 0, "length of pred / datas.y must be a multiple of a = 2*L*L"
    batch = n // A

    # torch.cat(dim=1) loop equivalence: chunk i of length A is column i of the
    # (A, batch) matrix; the row-major reshape (batch, A) is its transpose, so we
    # contract against `logical` rows instead of columns -> same scalar sum,
    # no host-side transpose.
    pred_rows = pred.reshape(batch, A).astype(jnp.float32)
    y_rows = y.reshape(batch, A).astype(jnp.float32)

    if batch <= MAX_TILE_B:
        tile_b = batch                      # single grid step, block == full array
        padded = batch
    else:
        tile_b = MAX_TILE_B                 # multiple of 8 -> legal sublane tiling
        padded = ((batch + tile_b - 1) // tile_b) * tile_b
    if padded != batch:
        pad = padded - batch                # zero rows contribute |sin(0)| = 0
        pred_rows = jnp.pad(pred_rows, ((0, pad), (0, 0)))
        y_rows = jnp.pad(y_rows, ((0, pad), (0, 0)))
    grid = (padded // tile_b,)

    out = pl.pallas_call(
        loss_kernel,
        out_shape=jax.ShapeDtypeStruct((1, 1), jnp.float32),
        grid=grid,
        in_specs=[
            pl.BlockSpec((N_LOGICAL, A), lambda i: (0, 0)),   # logical, resident
            pl.BlockSpec((tile_b, A), lambda i: (i, 0)),      # y rows
            pl.BlockSpec((tile_b, A), lambda i: (i, 0)),      # pred rows
        ],
        out_specs=pl.BlockSpec((1, 1), lambda i: (0, 0),
                               memory_space=pltpu.MemorySpace.SMEM),
        scratch_shapes=[pltpu.VMEM((tile_b, 1), jnp.float32)],
        # Scalar accumulation across the whole grid -> reduction axis is "arbitrary".
        # TODO(synk): on v7x (2 TCs) one could emit per-tile partials under a
        # "parallel" axis and sum them in JAX; at these sizes the kernel is
        # launch-latency bound, so this is not worth the extra dispatch.
        compiler_params=pltpu.CompilerParams(dimension_semantics=("arbitrary",)),
    )(logical.astype(jnp.float32), y_rows, pred_rows)
    return out[0, 0]


def reference_loss(pred, y, logical):
    # Faithful to the torch forward: column-stacked (A, batch), logical @ (tmp + res).
    batch = pred.shape[0] // A
    tmp = y.reshape(batch, A).T.astype(jnp.float32)
    res = pred.reshape(batch, A).T.astype(jnp.float32)
    loss_a = logical.astype(jnp.float32) @ (tmp + res)
    return jnp.sum(jnp.abs(jnp.sin(loss_a * HALF_PI)))


if __name__ == "__main__":
    key = jax.random.PRNGKey(0)
    k1, k2, k3 = jax.random.split(key, 3)

    batch = 4
    # Synthetic deterministic "logical" operator matrix (binary, as in the QEC code).
    # TODO(synk): real code builds `logical`/H_prep from error_generate.generate_PCM;
    # synthesized here with a fixed PRNG key instead.
    logical = jax.random.bernoulli(k1, p=0.5, shape=(N_LOGICAL, A)).astype(jnp.float32)
    # datas.y: binary syndromes/labels; pred: soft predictions in [0, 1].
    y = jax.random.bernoulli(k2, p=0.5, shape=(batch * A, 1)).astype(jnp.float32)
    pred = jax.random.uniform(k3, shape=(batch * A, 1), dtype=jnp.float32)

    out = jax.block_until_ready(loss_func(pred, y, logical))
    ref = jax.block_until_ready(reference_loss(pred, y, logical))
    assert jnp.allclose(out, ref, rtol=1e-5, atol=1e-5), (out, ref)

    print("KERNEL_OK")
</pallas_src>

<mosaic_0001>
module attributes {stable_mosaic.version = 11 : i64} {
  func.func @loss_kernel(%arg0: i32, %arg1: memref<4x32xf32, #tpu.memory_space<vmem>>, %arg2: memref<4x32xf32, #tpu.memory_space<vmem>>, %arg3: memref<4x32xf32, #tpu.memory_space<vmem>>, %arg4: memref<1x1xf32, #tpu.memory_space<smem>>, %arg5: memref<4x1xf32, #tpu.memory_space<vmem>>) attributes {dimension_semantics = [#tpu.dimension_semantics<arbitrary>], iteration_bounds = array<i64: 1>, scalar_prefetch = 0 : i64, scratch_operands = 1 : i64, tpu.core_type = #tpu.core_type<tc>, window_params = [{pipeline_mode = #tpu.pipeline_mode<synchronous>, transform_indices = @transform_0, window_bounds = array<i64: 4, 32>}, {transform_indices = @transform_1, window_bounds = array<i64: 4, 32>}, {transform_indices = @transform_2, window_bounds = array<i64: 4, 32>}, {transform_indices = @transform_3, window_bounds = array<i64: 1, 1>}]} {
    %c0_i32 = arith.constant 0 : i32
    %0 = arith.cmpi eq, %arg0, %c0_i32 : i32
    %1 = arith.extui %0 : i1 to i32
    %c0_i32_0 = arith.constant 0 : i32
    %2 = arith.cmpi ne, %1, %c0_i32_0 : i32
    scf.if %2 {
      %cst_20 = arith.constant 0.000000e+00 : f32
      %54 = vector.broadcast %cst_20 : f32 to vector<4x1xf32>
      %c0_21 = arith.constant 0 : index
      %c0_22 = arith.constant 0 : index
      %55 = vector.load %arg5[%c0_21, %c0_22] : memref<4x1xf32, #tpu.memory_space<vmem>>, vector<4x1xf32>
      tpu.vector_store %arg5[%c0_21, %c0_22], %54 {strides = array<i32>} : memref<4x1xf32, #tpu.memory_space<vmem>>, vector<4x1xf32>,
    } else {
    }
    %c0 = arith.constant 0 : index
    %c0_1 = arith.constant 0 : index
    %3 = vector.load %arg2[%c0, %c0_1] : memref<4x32xf32, #tpu.memory_space<vmem>>, vector<4x32xf32>
    %c0_2 = arith.constant 0 : index
    %c0_3 = arith.constant 0 : index
    %4 = vector.load %arg3[%c0_2, %c0_3] : memref<4x32xf32, #tpu.memory_space<vmem>>, vector<4x32xf32>
    %5 = arith.addf %3, %4 : vector<4x32xf32>
    %c0_4 = arith.constant 0 : index
    %c0_5 = arith.constant 0 : index
    %6 = vector.load %arg1[%c0_4, %c0_5] : memref<4x32xf32, #tpu.memory_space<vmem>>, vector<4x32xf32>
    %cst = arith.constant 0.000000e+00 : f32
    %7 = vector.broadcast %cst : f32 to vector<4x1xf32>
    %8 = vector.extract_strided_slice %6 {offsets = [0, 0], sizes = [1, 32], strides = [1, 1]} : vector<4x32xf32> to vector<1x32xf32>
    %9 = vector.broadcast %8 : vector<1x32xf32> to vector<4x32xf32>
    %10 = arith.mulf %5, %9 : vector<4x32xf32>
    %cst_6 = arith.constant dense<0.000000e+00> : vector<4xf32>
    %11 = vector.multi_reduction <add>, %10, %cst_6 [1] : vector<4x32xf32> to vector<4xf32>
    %12 = vector.shape_cast %11 : vector<4xf32> to vector<4x1xf32>
    %cst_7 = arith.constant 1.57079637 : f32
    %13 = vector.broadcast %cst_7 : f32 to vector<4x1xf32>
    %14 = arith.mulf %12, %13 : vector<4x1xf32>
    %15 = math.sin %14 : vector<4x1xf32>
    %16 = math.absf %15 : vector<4x1xf32>
    %17 = arith.addf %7, %16 : vector<4x1xf32>
    %18 = vector.extract_strided_slice %6 {offsets = [1, 0], sizes = [1, 32], strides = [1, 1]} : vector<4x32xf32> to vector<1x32xf32>
    %19 = vector.broadcast %18 : vector<1x32xf32> to vector<4x32xf32>
    %20 = arith.mulf %5, %19 : vector<4x32xf32>
    %cst_8 = arith.constant dense<0.000000e+00> : vector<4xf32>
    %21 = vector.multi_reduction <add>, %20, %cst_8 [1] : vector<4x32xf32> to vector<4xf32>
    %22 = vector.shape_cast %21 : vector<4xf32> to vector<4x1xf32>
    %cst_9 = arith.constant 1.57079637 : f32
    %23 = vector.broadcast %cst_9 : f32 to vector<4x1xf32>
    %24 = arith.mulf %22, %23 : vector<4x1xf32>
    %25 = math.sin %24 : vector<4x1xf32>
    %26 = math.absf %25 : vector<4x1xf32>
    %27 = arith.addf %17, %26 : vector<4x1xf32>
    %28 = vector.extract_strided_slice %6 {offsets = [2, 0], sizes = [1, 32], strides = [1, 1]} : vector<4x32xf32> to vector<1x32xf32>
    %29 = vector.broadcast %28 : vector<1x32xf32> to vector<4x32xf32>
    %30 = arith.mulf %5, %29 : vector<4x32xf32>
    %cst_10 = arith.constant dense<0.000000e+00> : vector<4xf32>
    %31 = vector.multi_reduction <add>, %30, %cst_10 [1] : vector<4x32xf32> to vector<4xf32>
    %32 = vector.shape_cast %31 : vector<4xf32> to vector<4x1xf32>
    %cst_11 = arith.constant 1.57079637 : f32
    %33 = vector.broadcast %cst_11 : f32 to vector<4x1xf32>
    %34 = arith.mulf %32, %33 : vector<4x1xf32>
    %35 = math.sin %34 : vector<4x1xf32>
    %36 = math.absf %35 : vector<4x1xf32>
    %37 = arith.addf %27, %36 : vector<4x1xf32>
    %38 = vector.extract_strided_slice %6 {offsets = [3, 0], sizes = [1, 32], strides = [1, 1]} : vector<4x32xf32> to vector<1x32xf32>
    %39 = vector.broadcast %38 : vector<1x32xf32> to vector<4x32xf32>
    %40 = arith.mulf %5, %39 : vector<4x32xf32>
    %cst_12 = arith.constant dense<0.000000e+00> : vector<4xf32>
    %41 = vector.multi_reduction <add>, %40, %cst_12 [1] : vector<4x32xf32> to vector<4xf32>
    %42 = vector.shape_cast %41 : vector<4xf32> to vector<4x1xf32>
    %cst_13 = arith.constant 1.57079637 : f32
    %43 = vector.broadcast %cst_13 : f32 to vector<4x1xf32>
    %44 = arith.mulf %42, %43 : vector<4x1xf32>
    %45 = math.sin %44 : vector<4x1xf32>
    %46 = math.absf %45 : vector<4x1xf32>
    %47 = arith.addf %37, %46 : vector<4x1xf32>
    %c0_14 = arith.constant 0 : index
    %c0_15 = arith.constant 0 : index
    %48 = vector.load %arg5[%c0_14, %c0_15] : memref<4x1xf32, #tpu.memory_space<vmem>>, vector<4x1xf32>
    %49 = arith.addf %48, %47 : vector<4x1xf32>
    %c0_16 = arith.constant 0 : index
    %c0_17 = arith.constant 0 : index
    %50 = vector.load %arg5[%c0_16, %c0_17] : memref<4x1xf32, #tpu.memory_space<vmem>>, vector<4x1xf32>
    tpu.vector_store %arg5[%c0_16, %c0_17], %49 {strides = array<i32>} : memref<4x1xf32, #tpu.memory_space<vmem>>, vector<4x1xf32>,
    %c0_i32_18 = arith.constant 0 : i32
    %51 = arith.cmpi eq, %arg0, %c0_i32_18 : i32
    %52 = arith.extui %51 : i1 to i32
    %c0_i32_19 = arith.constant 0 : i32
    %53 = arith.cmpi ne, %52, %c0_i32_19 : i32
    scf.if %53 {
      %c0_20 = arith.constant 0 : index
      %c0_21 = arith.constant 0 : index
      %54 = vector.load %arg5[%c0_20, %c0_21] : memref<4x1xf32, #tpu.memory_space<vmem>>, vector<4x1xf32>
      %55 = vector.shape_cast %54 : vector<4x1xf32> to vector<1x4x1xf32>
      %cst_22 = arith.constant dense<0.000000e+00> : vector<1xf32>
      %56 = vector.multi_reduction <add>, %55, %cst_22 [1, 2] : vector<1x4x1xf32> to vector<1xf32>
      %57 = vector.shape_cast %56 : vector<1xf32> to vector<1x1x1xf32>
      %58 = vector.extract %57[0, 0, 0] : f32 from vector<1x1x1xf32>
      %c0_23 = arith.constant 0 : index
      %c0_24 = arith.constant 0 : index
      %59 = memref.load %arg4[%c0_23, %c0_24] : memref<1x1xf32, #tpu.memory_space<smem>>
      memref.store %58, %arg4[%c0_23, %c0_24] : memref<1x1xf32, #tpu.memory_space<smem>>
    } else {
    }
    return
  }
  func.func @transform_0(%arg0: i32) -> (i32, i32) {
    %c0_i32 = arith.constant 0 : i32
    %c0_i32_0 = arith.constant 0 : i32
    %c0_i32_1 = arith.constant 0 : i32
    return %c0_i32, %c0_i32_0 : i32, i32
  }
  func.func @transform_1(%arg0: i32) -> (i32, i32) {
    %c0_i32 = arith.constant 0 : i32
    %c0_i32_0 = arith.constant 0 : i32
    return %arg0, %c0_i32 : i32, i32
  }
  func.func @transform_2(%arg0: i32) -> (i32, i32) {
    %c0_i32 = arith.constant 0 : i32
    %c0_i32_0 = arith.constant 0 : i32
    return %arg0, %c0_i32 : i32, i32
  }
  func.func @transform_3(%arg0: i32) -> (i32, i32) {
    %c0_i32 = arith.constant 0 : i32
    %c0_i32_0 = arith.constant 0 : i32
    %c0_i32_1 = arith.constant 0 : i32
    return %c0_i32, %c0_i32_0 : i32, i32
  }
}

</mosaic_0001>

<llo_original>
// kernel: loss_func.1
$region0: #{loss_func.1}
  #allocation0 [shape = 'u32[]', space=smem, size = 0x4, offset = 0x4, fixed_abs, tag = 'smem constant byte address 0x4 - core index']
  #allocation1 [shape = 'u32[144,128]{1,0:T(1,128)}', space=vmem, size = 0x12000, scoped, tag = 'internal scratch']
  #allocation2 [shape = 'f32[4,1]{1,0:T(4,128)}', space=vmem, size = 0x800, scoped, tag = 'scratch operand']
  %s0 = inlined_call_operand.vmem [shape: f32[4,32], index: 0, kind: input, shape index: {}]
  %s1 = inlined_call_operand.vmem [shape: f32[4,32], index: 1, kind: input, shape index: {}]
  %s2 = inlined_call_operand.vmem [shape: f32[4,32], index: 2, kind: input, shape index: {}]
  %s3 = inlined_call_operand.hbm [shape: f32[1,1], index: 3, kind: output, shape index: {}]
  %s4 = sld [smem:[#allocation0]]
  $region30: #{loss_func.1} parent=0
    _
  %s6 = ssub.s32 1, %s4
  %s7 = scalar_select 0, %s6, %s4
  $region1: #{loss_func.1} parent=0
    #allocation3 [shape = 'u8[512]{0}', space=smem, size = 0x200, scoped, tag = 'output window, operand 0, single buffered']
    #allocation4 [shape = 's32[1]{0}', space=sflag, size = 0x4, scoped, tag = 'scoped memory for loss_func.1']
    %8 = vsyncpa [#allocation4], 0
    // Predicated region
    $region2: #{loss_func.1} parent=1 // pred_check
      _
    $region3: #{loss_func.1} parent=1 // pred_check_branch
      %10 = sbr.rel (0) target = $region5
    $region4: #{loss_func.1} parent=1 // pred_region
      _
    $region5: #{loss_func.1} parent=1 // pred_fallthru
      _
    // Predicated region
    $region6: #{loss_func.1} parent=1 // pred_check
      _
    $region7: #{loss_func.1} parent=1 // pred_check_branch
      %12 = sbr.rel (0) target = $region9
    $region8: #{loss_func.1} parent=1 // pred_region
      _
    $region9: #{loss_func.1} parent=1 // pred_fallthru
      _
    // Predicated region
    $region10: #{loss_func.1} parent=1 // pred_check
      _
    $region11: #{loss_func.1} parent=1 // pred_check_branch
      %14 = sbr.rel (0) target = $region13
    $region12: #{loss_func.1} parent=1 // pred_region
      _
    $region13: #{loss_func.1} parent=1 // pred_fallthru
      _
    %p15 = scmp.eq.s32.totalorder 0, 0
    // Predicated region
    $region14: #{loss_func.1} parent=1 // pred_check
      %p16 = pneg %p15
    $region15: #{loss_func.1} parent=1 // pred_check_branch
      %18 = sbr.rel (%p16) target = $region17
    $region16: #{loss_func.1} parent=1 // pred_region
      %vm19 = vcmask 3072
      %20 = vst.msk [vmem:[#allocation2] sm:$0xf] %vm19, 0.0
    $region17: #{loss_func.1} parent=1 // pred_fallthru
      _
    %v21 = vld [vmem:[%s1] sm:$0xf]
    %v22 = vld [vmem:[%s2] sm:$0xf]
    %v23 = vadd.f32 %v21, %v22
    %v24 = vld [vmem:[%s0] sm:$0xf]
    %v25 = vlaneseq
    %v26 = vshrl.u32 %v25, 7
    %v27 = vsub.s32 0, %v26
    %v28 = vrot.slane %v24, %v27
    %v29 = vmul.f32 %v23, %v28
    %vm30 = vcmask 257024
    %v31 = vsel %vm30, %v29, 0.0
    %32 = vadd.xlane.f32.xlu0 %v31
    %v33 = vpop.xlane.xlu0 %32
    %v34 = vmul.f32 %v33, 1.5707964
    %v35 = vand.u32 2147483647, %v34
    %vm36 = vcmp.le.f32.partialorder %v35, 0.7853982
    %vm37 = vcmp.lt.s32.totalorder %v34, 0
    %v38 = vand.u32 %v34, 2139095040
    %v39 = vshrl.u32 %v38, 23
    %v40 = vsub.s32 %v39, 127
    %v41 = vand.u32 2147483647, %v34
    %v42 = vand.u32 %v41, 8388607
    %v43 = vor.u32 %v42, 8388608
    %v44 = vsub.s32 0, %v43
    %v45 = vadd.s32 %v40, 1
    %vm46 = vcmp.gt.s32.totalorder %v45, 0
    %v47 = vsel %vm46, %v45, 0
    %v48 = vshrl.u32 %v47, 5
    %v49 = vand.u32 %v47, 31
    %v50 = vsub.s32 32, %v49
    %v51 = vshrl.u32 683565275, %v50
    %v52 = vshll.u32 683565275, %v49
    %v53 = vshrl.u32 2475754826, %v50
    %v54 = vor.u32 %v52, %v53
    %v55 = vshll.u32 2475754826, %v49
    %v56 = vshrl.u32 2131351028, %v50
    %v57 = vor.u32 %v55, %v56
    %v58 = vshll.u32 2131351028, %v49
    %v59 = vshrl.u32 2102212464, %v50
    %v60 = vor.u32 %v58, %v59
    %v61 = vshll.u32 2102212464, %v49
    %v62 = vshrl.u32 920167782, %v50
    %v63 = vor.u32 %v61, %v62
    %v64 = vshll.u32 920167782, %v49
    %v65 = vshrl.u32 1326507024, %v50
    %v66 = vor.u32 %v64, %v65
    %vm67 = vcmp.lt.s32.totalorder %v48, 1
    %vm68 = vcmp.lt.s32.totalorder %v48, 2
    %vm69 = vcmp.lt.s32.totalorder %v48, 3
    %vm70 = vcmp.lt.s32.totalorder %v48, 4
    %v71 = vsel %vm67, %v51, %v54
    %v72 = vsel %vm70, %v60, 2102212464
    %v73 = vsel %vm69, %v57, %v72
    %v74 = vsel %vm68, %v71, %v73
    %v75 = vsel %vm67, %v54, %v57
    %v76 = vsel %vm70, %v63, 920167782
    %v77 = vsel %vm69, %v60, %v76
    %v78 = vsel %vm68, %v75, %v77
    %v79 = vsel %vm67, %v57, %v60
    %v80 = vsel %vm70, %v66, 1326507024
    %v81 = vsel %vm69, %v63, %v80
    %v82 = vsel %vm68, %v79, %v81
    %v83 = vshll.u32 %v43, 8
    %v84 = vmul.u32.u64.compose %v83, %v82
    %v85 = vextract.low.u32 %v84
    %v86 = vextract.high.u32 %v84
    %v87 = vmul.u32.u64.compose %v83, %v78
    %v88 = vextract.low.u32 %v87
    %v89 = vextract.high.u32 %v87
    %v90 = vmul.u32 %v83, %v74
    %v91 = vadd.s32 %v86, %v88
    %vm92 = vc.u32 %v86, %v88
    %v93 = vadd.s32 %v89, 1
    %v94 = vsel %vm92, %v93, %v89
    %v95 = vadd.s32 %v90, %v94
    %v96 = vadd.s32 %v95, 536870912
    %v97 = vshrl.u32 %v96, 30
    %v98 = vshll.u32 %v97, 30
    %v99 = vsub.s32 %v95, %v98
    %vm100 = vcmp.lt.s32.totalorder %v99, 0
    %v101 = vsub.s32 0, %v99
    %v102 = vsel %vm100, %v101, %v99
    %v103 = vclz %v102
    %v104 = vsub.s32 %v103, 2
    %vm105 = vcmp.gt.s32.totalorder 0, %v104
    %v106 = vsel %vm105, 0, %v104
    %v107 = vsub.s32 32, %v106
    %v108 = vshll.u32 %v99, %v106
    %v109 = vshrl.u32 %v91, %v107
    %v110 = vor.u32 %v108, %v109
    %v111 = vsub.s32 4294967266, %v106
    %v112 = vadd.s32 %v111, 127
    %v113 = vshll.u32 %v112, 23
    %v114 = vor.u32 4788187, %v113
    %v115 = vand.u32 2147483647, %v114
    %v117 = vcvt.s32.f32 %v110
    %v118 = vmul.f32 %v117, %v115
    %v119 = vxor.u32 %v118, 2147483648
    %v120 = vsel %vm37, %v119, %v118
    %v121 = vsub.s32 4, %v97
    %v122 = vsel %vm37, %v121, %v97
    %v123 = vsel %vm36, %v34, %v120
    %v124 = vsel %vm36, 0, %v122
    %v125 = vcosq.f32.pop %v123
    %v126 = vsinq.f32.pop %v123
    %vm127 = vweird.f32 %v34
    %v128 = vadd.s32 %v124, 3
    %v129 = vand.u32 %v128, 3
    %vm130 = vcmp.lt.s32.totalorder %v129, 2
    %vm131 = vcmp.eq.s32.totalorder %v129, 0
    %v132 = vxor.u32 %v126, 2147483648
    %v133 = vsel %vm131, %v125, %v132
    %vm134 = vcmp.eq.s32.totalorder %v129, 2
    %v135 = vxor.u32 %v125, 2147483648
    %v136 = vsel %vm134, %v135, %v126
    %v137 = vsel %vm130, %v133, %v136
    %v138 = vsel %vm127, nan, %v137
    %v139 = vand.u32 2147483647, %v138
    %v140 = vadd.f32 %v139, 0.0
    %v141 = vlaneseq
    %v142 = vshrl.u32 %v141, 7
    %v143 = vsub.s32 1, %v142
    %v144 = vrot.slane %v24, %v143
    %v145 = vmul.f32 %v23, %v144
    %v146 = vsel %vm30, %v145, 0.0
    %147 = vadd.xlane.f32.xlu0 %v146
    %v148 = vpop.xlane.xlu0 %147
    %v149 = vmul.f32 %v148, 1.5707964
    %v150 = vand.u32 2147483647, %v149
    %vm151 = vcmp.le.f32.partialorder %v150, 0.7853982
    %vm152 = vcmp.lt.s32.totalorder %v149, 0
    %v153 = vand.u32 %v149, 2139095040
    %v154 = vshrl.u32 %v153, 23
    %v155 = vsub.s32 %v154, 127
    %v156 = vand.u32 2147483647, %v149
    %v157 = vand.u32 %v156, 8388607
    %v158 = vor.u32 %v157, 8388608
    %v159 = vsub.s32 0, %v158
    %v160 = vadd.s32 %v155, 1
    %vm161 = vcmp.gt.s32.totalorder %v160, 0
    %v162 = vsel %vm161, %v160, 0
    %v163 = vshrl.u32 %v162, 5
    %v164 = vand.u32 %v162, 31
    %v165 = vsub.s32 32, %v164
    %v166 = vshrl.u32 683565275, %v165
    %v167 = vshll.u32 683565275, %v164
    %v168 = vshrl.u32 2475754826, %v165
    %v169 = vor.u32 %v167, %v168
    %v170 = vshll.u32 2475754826, %v164
    %v171 = vshrl.u32 2131351028, %v165
    %v172 = vor.u32 %v170, %v171
    %v173 = vshll.u32 2131351028, %v164
    %v174 = vshrl.u32 2102212464, %v165
    %v175 = vor.u32 %v173, %v174
    %v176 = vshll.u32 2102212464, %v164
    %v177 = vshrl.u32 920167782, %v165
    %v178 = vor.u32 %v176, %v177
    %v179 = vshll.u32 920167782, %v164
    %v180 = vshrl.u32 1326507024, %v165
    %v181 = vor.u32 %v179, %v180
    %vm182 = vcmp.lt.s32.totalorder %v163, 1
    %vm183 = vcmp.lt.s32.totalorder %v163, 2
    %vm184 = vcmp.lt.s32.totalorder %v163, 3
    %vm185 = vcmp.lt.s32.totalorder %v163, 4
    %v186 = vsel %vm182, %v166, %v169
    %v187 = vsel %vm185, %v175, 2102212464
    %v188 = vsel %vm184, %v172, %v187
    %v189 = vsel %vm183, %v186, %v188
    %v190 = vsel %vm182, %v169, %v172
    %v191 = vsel %vm185, %v178, 920167782
    %v192 = vsel %vm184, %v175, %v191
    %v193 = vsel %vm183, %v190, %v192
    %v194 = vsel %vm182, %v172, %v175
    %v195 = vsel %vm185, %v181, 1326507024
    %v196 = vsel %vm184, %v178, %v195
    %v197 = vsel %vm183, %v194, %v196
    %v198 = vshll.u32 %v158, 8
    %v199 = vmul.u32.u64.compose %v198, %v197
    %v200 = vextract.low.u32 %v199
    %v201 = vextract.high.u32 %v199
    %v202 = vmul.u32.u64.compose %v198, %v193
    %v203 = vextract.low.u32 %v202
    %v204 = vextract.high.u32 %v202
    %v205 = vmul.u32 %v198, %v189
    %v206 = vadd.s32 %v201, %v203
    %vm207 = vc.u32 %v201, %v203
    %v208 = vadd.s32 %v204, 1
    %v209 = vsel %vm207, %v208, %v204
    %v210 = vadd.s32 %v205, %v209
    %v211 = vadd.s32 %v210, 536870912
    %v212 = vshrl.u32 %v211, 30
    %v213 = vshll.u32 %v212, 30
    %v214 = vsub.s32 %v210, %v213
    %vm215 = vcmp.lt.s32.totalorder %v214, 0
    %v216 = vsub.s32 0, %v214
    %v217 = vsel %vm215, %v216, %v214
    %v218 = vclz %v217
    %v219 = vsub.s32 %v218, 2
    %vm220 = vcmp.gt.s32.totalorder 0, %v219
    %v221 = vsel %vm220, 0, %v219
    %v222 = vsub.s32 32, %v221
    %v223 = vshll.u32 %v214, %v221
    %v224 = vshrl.u32 %v206, %v222
    %v225 = vor.u32 %v223, %v224
    %v226 = vsub.s32 4294967266, %v221
    %v227 = vadd.s32 %v226, 127
    %v228 = vshll.u32 %v227, 23
    %v229 = vor.u32 4788187, %v228
    %v230 = vand.u32 2147483647, %v229
    %v232 = vcvt.s32.f32 %v225
    %v233 = vmul.f32 %v232, %v230
    %v234 = vxor.u32 %v233, 2147483648
    %v235 = vsel %vm152, %v234, %v233
    %v236 = vsub.s32 4, %v212
    %v237 = vsel %vm152, %v236, %v212
    %v238 = vsel %vm151, %v149, %v235
    %v239 = vsel %vm151, 0, %v237
    %v240 = vcosq.f32.pop %v238
    %v241 = vsinq.f32.pop %v238
    %vm242 = vweird.f32 %v149
    %v243 = vadd.s32 %v239, 3
    %v244 = vand.u32 %v243, 3
    %vm245 = vcmp.lt.s32.totalorder %v244, 2
    %vm246 = vcmp.eq.s32.totalorder %v244, 0
    %v247 = vxor.u32 %v241, 2147483648
    %v248 = vsel %vm246, %v240, %v247
    %vm249 = vcmp.eq.s32.totalorder %v244, 2
    %v250 = vxor.u32 %v240, 2147483648
    %v251 = vsel %vm249, %v250, %v241
    %v252 = vsel %vm245, %v248, %v251
    %v253 = vsel %vm242, nan, %v252
    %v254 = vand.u32 2147483647, %v253
    %v255 = vadd.f32 %v140, %v254
    %v256 = vlaneseq
    %v257 = vshrl.u32 %v256, 7
    %v258 = vsub.s32 2, %v257
    %v259 = vrot.slane %v24, %v258
    %v260 = vmul.f32 %v23, %v259
    %v261 = vsel %vm30, %v260, 0.0
    %262 = vadd.xlane.f32.xlu0 %v261
    %v263 = vpop.xlane.xlu0 %262
    %v264 = vmul.f32 %v263, 1.5707964
    %v265 = vand.u32 2147483647, %v264
    %vm266 = vcmp.le.f32.partialorder %v265, 0.7853982
    %vm267 = vcmp.lt.s32.totalorder %v264, 0
    %v268 = vand.u32 %v264, 2139095040
    %v269 = vshrl.u32 %v268, 23
    %v270 = vsub.s32 %v269, 127
    %v271 = vand.u32 2147483647, %v264
    %v272 = vand.u32 %v271, 8388607
    %v273 = vor.u32 %v272, 8388608
    %v274 = vsub.s32 0, %v273
    %v275 = vadd.s32 %v270, 1
    %vm276 = vcmp.gt.s32.totalorder %v275, 0
    %v277 = vsel %vm276, %v275, 0
    %v278 = vshrl.u32 %v277, 5
    %v279 = vand.u32 %v277, 31
    %v280 = vsub.s32 32, %v279
    %v281 = vshrl.u32 683565275, %v280
    %v282 = vshll.u32 683565275, %v279
    %v283 = vshrl.u32 2475754826, %v280
    %v284 = vor.u32 %v282, %v283
    %v285 = vshll.u32 2475754826, %v279
    %v286 = vshrl.u32 2131351028, %v280
    %v287 = vor.u32 %v285, %v286
    %v288 = vshll.u32 2131351028, %v279
    %v289 = vshrl.u32 2102212464, %v280
    %v290 = vor.u32 %v288, %v289
    %v291 = vshll.u32 2102212464, %v279
    %v292 = vshrl.u32 920167782, %v280
    %v293 = vor.u32 %v291, %v292
    %v294 = vshll.u32 920167782, %v279
    %v295 = vshrl.u32 1326507024, %v280
    %v296 = vor.u32 %v294, %v295
    %vm297 = vcmp.lt.s32.totalorder %v278, 1
    %vm298 = vcmp.lt.s32.totalorder %v278, 2
    %vm299 = vcmp.lt.s32.totalorder %v278, 3
    %vm300 = vcmp.lt.s32.totalorder %v278, 4
    %v301 = vsel %vm297, %v281, %v284
    %v302 = vsel %vm300, %v290, 2102212464
    %v303 = vsel %vm299, %v287, %v302
    %v304 = vsel %vm298, %v301, %v303
    %v305 = vsel %vm297, %v284, %v287
    %v306 = vsel %vm300, %v293, 920167782
    %v307 = vsel %vm299, %v290, %v306
    %v308 = vsel %vm298, %v305, %v307
    %v309 = vsel %vm297, %v287, %v290
    %v310 = vsel %vm300, %v296, 1326507024
    %v311 = vsel %vm299, %v293, %v310
    %v312 = vsel %vm298, %v309, %v311
    %v313 = vshll.u32 %v273, 8
    %v314 = vmul.u32.u64.compose %v313, %v312
    %v315 = vextract.low.u32 %v314
    %v316 = vextract.high.u32 %v314
    %v317 = vmul.u32.u64.compose %v313, %v308
    %v318 = vextract.low.u32 %v317
    %v319 = vextract.high.u32 %v317
    %v320 = vmul.u32 %v313, %v304
    %v321 = vadd.s32 %v316, %v318
    %vm322 = vc.u32 %v316, %v318
    %v323 = vadd.s32 %v319, 1
    %v324 = vsel %vm322, %v323, %v319
    %v325 = vadd.s32 %v320, %v324
    %v326 = vadd.s32 %v325, 536870912
    %v327 = vshrl.u32 %v326, 30
    %v328 = vshll.u32 %v327, 30
    %v329 = vsub.s32 %v325, %v328
    %vm330 = vcmp.lt.s32.totalorder %v329, 0
    %v331 = vsub.s32 0, %v329
    %v332 = vsel %vm330, %v331, %v329
    %v333 = vclz %v332
    %v334 = vsub.s32 %v333, 2
    %vm335 = vcmp.gt.s32.totalorder 0, %v334
    %v336 = vsel %vm335, 0, %v334
    %v337 = vsub.s32 32, %v336
    %v338 = vshll.u32 %v329, %v336
    %v339 = vshrl.u32 %v321, %v337
    %v340 = vor.u32 %v338, %v339
    %v341 = vsub.s32 4294967266, %v336
    %v342 = vadd.s32 %v341, 127
    %v343 = vshll.u32 %v342, 23
    %v344 = vor.u32 4788187, %v343
    %v345 = vand.u32 2147483647, %v344
    %v347 = vcvt.s32.f32 %v340
    %v348 = vmul.f32 %v347, %v345
    %v349 = vxor.u32 %v348, 2147483648
    %v350 = vsel %vm267, %v349, %v348
    %v351 = vsub.s32 4, %v327
    %v352 = vsel %vm267, %v351, %v327
    %v353 = vsel %vm266, %v264, %v350
    %v354 = vsel %vm266, 0, %v352
    %v355 = vcosq.f32.pop %v353
    %v356 = vsinq.f32.pop %v353
    %vm357 = vweird.f32 %v264
    %v358 = vadd.s32 %v354, 3
    %v359 = vand.u32 %v358, 3
    %vm360 = vcmp.lt.s32.totalorder %v359, 2
    %vm361 = vcmp.eq.s32.totalorder %v359, 0
    %v362 = vxor.u32 %v356, 2147483648
    %v363 = vsel %vm361, %v355, %v362
    %vm364 = vcmp.eq.s32.totalorder %v359, 2
    %v365 = vxor.u32 %v355, 2147483648
    %v366 = vsel %vm364, %v365, %v356
    %v367 = vsel %vm360, %v363, %v366
    %v368 = vsel %vm357, nan, %v367
    %v369 = vand.u32 2147483647, %v368
    %v370 = vadd.f32 %v255, %v369
    %v371 = vlaneseq
    %v372 = vshrl.u32 %v371, 7
    %v373 = vsub.s32 3, %v372
    %v374 = vrot.slane %v24, %v373
    %v375 = vmul.f32 %v23, %v374
    %v376 = vsel %vm30, %v375, 0.0
    %377 = vadd.xlane.f32.xlu0 %v376
    %v378 = vpop.xlane.xlu0 %377
    %v379 = vmul.f32 %v378, 1.5707964
    %v380 = vand.u32 2147483647, %v379
    %vm381 = vcmp.le.f32.partialorder %v380, 0.7853982
    %vm382 = vcmp.lt.s32.totalorder %v379, 0
    %v383 = vand.u32 %v379, 2139095040
    %v384 = vshrl.u32 %v383, 23
    %v385 = vsub.s32 %v384, 127
    %v386 = vand.u32 2147483647, %v379
    %v387 = vand.u32 %v386, 8388607
    %v388 = vor.u32 %v387, 8388608
    %v389 = vsub.s32 0, %v388
    %v390 = vadd.s32 %v385, 1
    %vm391 = vcmp.gt.s32.totalorder %v390, 0
    %v392 = vsel %vm391, %v390, 0
    %v393 = vshrl.u32 %v392, 5
    %v394 = vand.u32 %v392, 31
    %v395 = vsub.s32 32, %v394
    %v396 = vshrl.u32 683565275, %v395
    %v397 = vshll.u32 683565275, %v394
    %v398 = vshrl.u32 2475754826, %v395
    %v399 = vor.u32 %v397, %v398
    %v400 = vshll.u32 2475754826, %v394
    %v401 = vshrl.u32 2131351028, %v395
    %v402 = vor.u32 %v400, %v401
    %v403 = vshll.u32 2131351028, %v394
    %v404 = vshrl.u32 2102212464, %v395
    %v405 = vor.u32 %v403, %v404
    %v406 = vshll.u32 2102212464, %v394
    %v407 = vshrl.u32 920167782, %v395
    %v408 = vor.u32 %v406, %v407
    %v409 = vshll.u32 920167782, %v394
    %v410 = vshrl.u32 1326507024, %v395
    %v411 = vor.u32 %v409, %v410
    %vm412 = vcmp.lt.s32.totalorder %v393, 1
    %vm413 = vcmp.lt.s32.totalorder %v393, 2
    %vm414 = vcmp.lt.s32.totalorder %v393, 3
    %vm415 = vcmp.lt.s32.totalorder %v393, 4
    %v416 = vsel %vm412, %v396, %v399
    %v417 = vsel %vm415, %v405, 2102212464
    %v418 = vsel %vm414, %v402, %v417
    %v419 = vsel %vm413, %v416, %v418
    %v420 = vsel %vm412, %v399, %v402
    %v421 = vsel %vm415, %v408, 920167782
    %v422 = vsel %vm414, %v405, %v421
    %v423 = vsel %vm413, %v420, %v422
    %v424 = vsel %vm412, %v402, %v405
    %v425 = vsel %vm415, %v411, 1326507024
    %v426 = vsel %vm414, %v408, %v425
    %v427 = vsel %vm413, %v424, %v426
    %v428 = vshll.u32 %v388, 8
    %v429 = vmul.u32.u64.compose %v428, %v427
    %v430 = vextract.low.u32 %v429
    %v431 = vextract.high.u32 %v429
    %v432 = vmul.u32.u64.compose %v428, %v423
    %v433 = vextract.low.u32 %v432
    %v434 = vextract.high.u32 %v432
    %v435 = vmul.u32 %v428, %v419
    %v436 = vadd.s32 %v431, %v433
    %vm437 = vc.u32 %v431, %v433
    %v438 = vadd.s32 %v434, 1
    %v439 = vsel %vm437, %v438, %v434
    %v440 = vadd.s32 %v435, %v439
    %v441 = vadd.s32 %v440, 536870912
    %v442 = vshrl.u32 %v441, 30
    %v443 = vshll.u32 %v442, 30
    %v444 = vsub.s32 %v440, %v443
    %vm445 = vcmp.lt.s32.totalorder %v444, 0
    %v446 = vsub.s32 0, %v444
    %v447 = vsel %vm445, %v446, %v444
    %v448 = vclz %v447
    %v449 = vsub.s32 %v448, 2
    %vm450 = vcmp.gt.s32.totalorder 0, %v449
    %v451 = vsel %vm450, 0, %v449
    %v452 = vsub.s32 32, %v451
    %v453 = vshll.u32 %v444, %v451
    %v454 = vshrl.u32 %v436, %v452
    %v455 = vor.u32 %v453, %v454
    %v456 = vsub.s32 4294967266, %v451
    %v457 = vadd.s32 %v456, 127
    %v458 = vshll.u32 %v457, 23
    %v459 = vor.u32 4788187, %v458
    %v460 = vand.u32 2147483647, %v459
    %v462 = vcvt.s32.f32 %v455
    %v463 = vmul.f32 %v462, %v460
    %v464 = vxor.u32 %v463, 2147483648
    %v465 = vsel %vm382, %v464, %v463
    %v466 = vsub.s32 4, %v442
    %v467 = vsel %vm382, %v466, %v442
    %v468 = vsel %vm381, %v379, %v465
    %v469 = vsel %vm381, 0, %v467
    %v470 = vcosq.f32.pop %v468
    %v471 = vsinq.f32.pop %v468
    %vm472 = vweird.f32 %v379
    %v473 = vadd.s32 %v469, 3
    %v474 = vand.u32 %v473, 3
    %vm475 = vcmp.lt.s32.totalorder %v474, 2
    %vm476 = vcmp.eq.s32.totalorder %v474, 0
    %v477 = vxor.u32 %v471, 2147483648
    %v478 = vsel %vm476, %v470, %v477
    %vm479 = vcmp.eq.s32.totalorder %v474, 2
    %v480 = vxor.u32 %v470, 2147483648
    %v481 = vsel %vm479, %v480, %v471
    %v482 = vsel %vm475, %v478, %v481
    %v483 = vsel %vm472, nan, %v482
    %v484 = vand.u32 2147483647, %v483
    %v485 = vadd.f32 %v370, %v484
    %v486 = vld [vmem:[#allocation2] sm:$0xf]
    %v487 = vadd.f32 %v486, %v485
    %vm488 = vcmask 3072
    %489 = vst.msk [vmem:[#allocation2] sm:$0xf] %vm488, %v487
    // Predicated region
    $region18: #{loss_func.1} parent=1 // pred_check
      %p490 = pneg %p15
    $region19: #{loss_func.1} parent=1 // pred_check_branch
      %492 = sbr.rel (%p490) target = $region21
    $region20: #{loss_func.1} parent=1 // pred_region
      %v493 = vld [vmem:[#allocation2] sm:$0xf]
      %v494 = vsel %vm488, %v493, 0.0
      %495 = vadd.xlane.f32.xlu0 %v494
      %v496 = vpop.xlane.xlu0 %495
      %v497 = vrot.slane %v496, 4
      %v498 = vadd.f32 %v496, %v497
      %v499 = vrot.slane %v498, 2
      %v500 = vadd.f32 %v498, %v499
      %v501 = vrot.slane %v500, 1
      %v502 = vadd.f32 %v500, %v501
      %s503 = vtos %v502
      %s504 = scalar_lea.smem [#allocation3], 0
      %505 = sst [smem:[%s504]] %s503
    $region21: #{loss_func.1} parent=1 // pred_fallthru
      _
    // Predicated region
    $region22: #{loss_func.1} parent=1 // pred_check
      _
    $region23: #{loss_func.1} parent=1 // pred_check_branch
      %507 = sbr.rel (0) target = $region25
    $region24: #{loss_func.1} parent=1 // pred_region
      %s509 = ssub.s32 16, 16
      %510 = vsyncadd [#allocation4], %s509
      %513 = dma.smem_to_hbm [#allocation3], 16, %s3, [#allocation4]
    $region25: #{loss_func.1} parent=1 // pred_fallthru
      _
    // Predicated region
    $region26: #{loss_func.1} parent=1 // pred_check
      _
    $region27: #{loss_func.1} parent=1 // pred_check_branch
      %515 = sbr.rel (0) target = $region29
    $region28: #{loss_func.1} parent=1 // pred_region
      %516 = dma.done [#allocation4], 16
    $region29: #{loss_func.1} parent=1 // pred_fallthru
      _
    %517 = sfence
    %518 = vsyncpa [#allocation4], 1

</llo_original>
